<compile_context>
chip_gen: v5e
topology: v5e:2x2
jax: 0.10.0
libtpu: 0.0.40
codegen_flags: <defaults>
</compile_context>

<pallas_src>
import jax
import jax.numpy as jnp
from jax.experimental import pallas as pl
from jax.experimental.pallas import tpu as pltpu


# ---------------------------------------------------------------------------
# Kernels: one elementwise multiply. dtype promotion happens in-register so the
# wrapper never pre-casts (no extra HBM passes for bf16 losses).
# ---------------------------------------------------------------------------
def _vector_weight_kernel(w_ref, losses_ref, out_ref):
    out_ref[...] = (w_ref[...] * losses_ref[...]).astype(out_ref.dtype)


def _scalar_weight_kernel(w_ref, losses_ref, out_ref):
    # w_ref is a (1,1) float32 scalar living in SMEM; only losses stream HBM.
    out_ref[...] = (w_ref[0, 0] * losses_ref[...]).astype(out_ref.dtype)


_LANE = 128
_TILE_ROWS = 2048                 # 2048 x 512 x f32 = 4 MiB per block
_TILE_COLS = 512                  # lane-dense (multiple of 128) output width
_SMALL_SLAB = _TILE_ROWS * _TILE_COLS
# Below this, XLA's fused elementwise multiply already runs at HBM roofline
# with zero pad/reshape/slice copies — Pallas only pays off for large vectors.
_PALLAS_MIN_ELEMS = 1 << 20


def _dimension_semantics():
    # v7x has 2 TensorCores/chip; plain "parallel" does not engage the second
    # core, CORE_PARALLEL does. Other generations keep "parallel".
    try:
        kind = jax.devices()[0].device_kind.lower()
    except Exception:  # pragma: no cover - defensive; backend query only
        kind = ""
    if "v7" in kind:
        return (pltpu.CORE_PARALLEL,)
    return ("parallel",)


def _pad_to(x, n_pad):
    n = x.shape[0]
    if n_pad == n:
        return x
    return jnp.pad(x, (0, n_pad - n))


def _weighted_losses_pallas(losses_flat, weights, out_dtype):
    """weights * losses on a flat vector via Pallas.

    `weights` is either a single-element array (scalar weight -> SMEM path) or
    a flat float32 vector of the same length as `losses_flat`.
    """
    n = losses_flat.shape[0]
    scalar_w = weights.size == 1

    if scalar_w:
        w_arg = weights.reshape(1, 1).astype(jnp.float32)
        kernel = _scalar_weight_kernel
        w_smem_spec = pl.BlockSpec(memory_space=pltpu.MemorySpace.SMEM)
    else:
        kernel = _vector_weight_kernel

    # ---------------- small path: single whole-array block, no grid ----------
    if n <= _SMALL_SLAB:
        n_pad = pl.cdiv(n, _LANE) * _LANE
        rows = n_pad // _LANE
        lp = _pad_to(losses_flat, n_pad).reshape(rows, _LANE)
        out_shape = jax.ShapeDtypeStruct((rows, _LANE), out_dtype)
        if scalar_w:
            out = pl.pallas_call(
                kernel,
                out_shape=out_shape,
                in_specs=[w_smem_spec,
                          pl.BlockSpec(memory_space=pltpu.MemorySpace.VMEM)],
                out_specs=pl.BlockSpec(memory_space=pltpu.MemorySpace.VMEM),
            )(w_arg, lp)
        else:
            wp = _pad_to(weights, n_pad).reshape(rows, _LANE)
            out = pl.pallas_call(kernel, out_shape=out_shape)(wp, lp)
        flat = out.reshape(n_pad)
        return flat if n_pad == n else flat[:n]

    # ---------------- large path: (rows, 512) slab, (2048, 512) tiles --------
    # Pad only to a multiple of the 512-lane width (<= 511 elems); the partial
    # last row-block is handled by Pallas (masked writes), and the trailing
    # [:n] slice discards any padded lanes.
    n_pad = pl.cdiv(n, _TILE_COLS) * _TILE_COLS
    rows = n_pad // _TILE_COLS
    grid = (pl.cdiv(rows, _TILE_ROWS),)
    lp = _pad_to(losses_flat, n_pad).reshape(rows, _TILE_COLS)
    tile_spec = pl.BlockSpec((_TILE_ROWS, _TILE_COLS), lambda i: (i, 0))

    in_bytes = lp.size * lp.dtype.itemsize
    out_bytes = lp.size * jnp.dtype(out_dtype).itemsize
    if scalar_w:
        in_specs = [w_smem_spec, tile_spec]
        args = (w_arg, lp)
        w_bytes = 0
    else:
        wp = _pad_to(weights, n_pad).reshape(rows, _TILE_COLS)
        in_specs = [tile_spec, tile_spec]
        args = (wp, lp)
        w_bytes = wp.size * wp.dtype.itemsize

    out = pl.pallas_call(
        kernel,
        out_shape=jax.ShapeDtypeStruct((rows, _TILE_COLS), out_dtype),
        grid=grid,
        in_specs=in_specs,
        out_specs=pl.BlockSpec((_TILE_ROWS, _TILE_COLS), lambda i: (i, 0)),
        compiler_params=pltpu.CompilerParams(
            dimension_semantics=_dimension_semantics(),
            # 3 streams x 2 buffers x 4 MiB = 24 MiB double-buffered; raise the
            # scoped limit so the 2048-row tiles also fit v5e's 16 MiB default
            # (well within every generation's physical VMEM).
            vmem_limit_bytes=48 << 20,
        ),
        cost_estimate=pl.CostEstimate(
            flops=n, transcendentals=0,
            bytes_accessed=in_bytes + out_bytes + w_bytes),
    )(*args)
    flat = out.reshape(n_pad)
    return flat if n_pad == n else flat[:n]


def loss_balancer_forward(*losses, weights=None, use_pallas=None):
    """JAX equivalent of LossBalancer.forward(*losses, weights=weights).

    `losses` may be several scalar losses, a list/tuple of losses, or a single
    already-stacked array (preferred on the hot path).
    """
    # try_stack()
    if len(losses) == 1 and isinstance(losses[0], (list, tuple)):
        losses = tuple(losses[0])
    if len(losses) == 1:
        losses0 = jnp.asarray(losses[0])
    else:
        losses0 = jnp.stack([jnp.asarray(l) for l in losses])

    # self.weigh() returns ones([N]); with weights None, w * losses == losses,
    # so skip the kernel, the ones materialization and all DMAs.
    if weights is None:
        return losses0

    # torch.Tensor(weights) -> float32; output dtype follows torch promotion.
    w = jnp.asarray(weights, jnp.float32)
    out_dtype = jnp.result_type(losses0.dtype, w.dtype)

    n_elems = losses0.size
    if use_pallas is None:
        use_pallas = n_elems >= _PALLAS_MIN_ELEMS
    if not use_pallas:
        # Typical case (a handful of scalar losses, or mid-size vectors):
        # a fused XLA multiply is already at HBM roofline with zero copies.
        return (w * losses0).astype(out_dtype)

    if w.size != 1 and w.shape != losses0.shape:
        # Non-scalar but broadcastable weights (rare): materialize broadcast.
        w = jnp.broadcast_to(w, losses0.shape)

    flat = _weighted_losses_pallas(
        losses0.reshape(-1),
        w if w.size == 1 else w.reshape(-1),
        out_dtype,
    )
    return flat.reshape(losses0.shape)


# TODO(synk): `reduction`/`detach`/`.to(device)` bookkeeping from the PyTorch
# module has no Pallas equivalent; reductions should be applied by the caller
# before stacking (as reduce_losses does).


if __name__ == "__main__":
    key = jax.random.PRNGKey(0)

    # --- typical module usage: 4 scalar losses ------------------------------
    n_losses = 4
    raw = jax.random.uniform(key, (n_losses,), dtype=jnp.float32)
    scalar_losses = [raw[i] for i in range(n_losses)]
    ext_w = jnp.array([0.5, 1.0, 2.0, 0.25], dtype=jnp.float32)

    # Case 1: no external weights -> output == stacked losses (no kernel).
    out1 = jax.block_until_ready(loss_balancer_forward(*scalar_losses))
    assert jnp.allclose(out1, raw, atol=1e-6), (out1, raw)

    # Case 2: external weights, small N -> fused XLA path.
    out2 = jax.block_until_ready(loss_balancer_forward(*scalar_losses, weights=ext_w))
    assert jnp.allclose(out2, ext_w * raw, atol=1e-6), (out2, ext_w * raw)

    # Case 3: force the Pallas small path (whole-array block, vector weights).
    out3 = jax.block_until_ready(
        loss_balancer_forward(raw, weights=ext_w, use_pallas=True)
    )
    assert jnp.allclose(out3, ext_w * raw, atol=1e-6), (out3, ext_w * raw)

    # Case 4: scalar (broadcastable) weight, Pallas SMEM-scalar kernel.
    out4 = jax.block_until_ready(
        loss_balancer_forward(raw, weights=2.0, use_pallas=True)
    )
    assert jnp.allclose(out4, 2.0 * raw, atol=1e-6), (out4, 2.0 * raw)

    # Case 5: large stacked loss vector -> tiled Pallas path with a partial
    # last row-block (grid > 1, <=511-elem lane padding, [:n] slice).
    key_l, key_w = jax.random.split(jax.random.PRNGKey(0))
    n_big = _SMALL_SLAB + 1000
    big_losses = jax.random.uniform(key_l, (n_big,), dtype=jnp.float32)
    big_weights = jax.random.uniform(key_w, (n_big,), dtype=jnp.float32)
    out5 = jax.block_until_ready(
        loss_balancer_forward(big_losses, weights=big_weights)
    )
    ref5 = big_weights * big_losses
    assert out5.shape == (n_big,)
    assert jnp.allclose(out5, ref5, atol=1e-6)

    # Case 6: large vector with a scalar weight -> SMEM path, 2 HBM streams.
    out6 = jax.block_until_ready(
        loss_balancer_forward(big_losses, weights=0.5)
    )
    assert jnp.allclose(out6, 0.5 * big_losses, atol=1e-6)

    print("KERNEL_OK")
</pallas_src>

<mosaic_0001>
module attributes {stable_mosaic.version = 11 : i64} {
  func.func @_vector_weight_kernel(%arg0: memref<1x128xf32, #tpu.memory_space<vmem>>, %arg1: memref<1x128xf32, #tpu.memory_space<vmem>>, %arg2: memref<1x128xf32, #tpu.memory_space<vmem>>) attributes {dimension_semantics = [], scalar_prefetch = 0 : i64, scratch_operands = 0 : i64, tpu.core_type = #tpu.core_type<tc>} {
    %c0 = arith.constant 0 : index
    %c0_0 = arith.constant 0 : index
    %0 = vector.load %arg0[%c0, %c0_0] : memref<1x128xf32, #tpu.memory_space<vmem>>, vector<1x128xf32>
    %c0_1 = arith.constant 0 : index
    %c0_2 = arith.constant 0 : index
    %1 = vector.load %arg1[%c0_1, %c0_2] : memref<1x128xf32, #tpu.memory_space<vmem>>, vector<1x128xf32>
    %2 = arith.mulf %0, %1 : vector<1x128xf32>
    %c0_3 = arith.constant 0 : index
    %c0_4 = arith.constant 0 : index
    %3 = vector.load %arg2[%c0_3, %c0_4] : memref<1x128xf32, #tpu.memory_space<vmem>>, vector<1x128xf32>
    tpu.vector_store %arg2[%c0_3, %c0_4], %2 {strides = array<i32>} : memref<1x128xf32, #tpu.memory_space<vmem>>, vector<1x128xf32>,
    return
  }
}

</mosaic_0001>

<llo_original>
// kernel: tpu_custom_call.1
$region0: #{tpu_custom_call.1}
  #allocation0 [shape = 'u32[]', space=smem, size = 0x4, offset = 0x4, fixed_abs, tag = 'smem constant byte address 0x4 - core index']
  #allocation1 [shape = 'u32[72,128]{1,0:T(1,128)}', space=vmem, size = 0x9000, scoped, tag = 'internal scratch']
  %s0 = inlined_call_operand.hbm [shape: f32[1,128], index: 0, kind: input, shape index: {}]
  %s1 = inlined_call_operand.hbm [shape: f32[1,128], index: 1, kind: input, shape index: {}]
  %s2 = inlined_call_operand.hbm [shape: f32[1,128], index: 2, kind: output, shape index: {}]
  %s3 = sld [smem:[#allocation0]]
  $region26: #{tpu_custom_call.1} parent=0
    _
  %s5 = ssub.s32 1, %s3
  %s6 = scalar_select 0, %s5, %s3
  $region1: #{tpu_custom_call.1} parent=0
    #allocation2 [shape = 'u8[512]{0}', space=vmem, size = 0x400, scoped, tag = 'input window, operand 0, single buffered']
    #allocation3 [shape = 's32[1]{0}', space=sflag, size = 0x4, scoped, tag = 'scoped memory for tpu_custom_call.1']
    #allocation4 [shape = 's32[1]{0}', space=sflag, size = 0x4, scoped, tag = 'scoped memory for tpu_custom_call.1']
    #allocation5 [shape = 'u8[512]{0}', space=vmem, size = 0x400, scoped, tag = 'input window, operand 1, single buffered']
    #allocation6 [shape = 's32[1]{0}', space=sflag, size = 0x4, scoped, tag = 'scoped memory for tpu_custom_call.1']
    #allocation7 [shape = 'u8[512]{0}', space=vmem, size = 0x400, scoped, tag = 'output window, operand 0, single buffered']
    %7 = vsyncpa [#allocation3], 0
    %8 = vsyncpa [#allocation6], 0
    %9 = vsyncpa [#allocation4], 0
    // Predicated region
    $region2: #{tpu_custom_call.1} parent=1 // pred_check
      _
    $region3: #{tpu_custom_call.1} parent=1 // pred_check_branch
      %11 = sbr.rel (0) target = $region5
    $region4: #{tpu_custom_call.1} parent=1 // pred_region
      %13 = vsyncadd [#allocation3], 0
      %s15 = sshll.u32 %s0, 4
      %s16 = int_to_ptr.hbm [resolvable:$true] %s15
      %s17 = sshll.u32 [#allocation2], 4
      %s18 = int_to_ptr.vmem [resolvable:$true] %s17
      %20 = dma.hbm_to_vmem [thread:$0]  %s16, 16, %s18, [#allocation3]
    $region5: #{tpu_custom_call.1} parent=1 // pred_fallthru
      _
    // Predicated region
    $region6: #{tpu_custom_call.1} parent=1 // pred_check
      _
    $region7: #{tpu_custom_call.1} parent=1 // pred_check_branch
      %22 = sbr.rel (0) target = $region9
    $region8: #{tpu_custom_call.1} parent=1 // pred_region
      %24 = vsyncadd [#allocation6], 0
      %s26 = sshll.u32 %s1, 4
      %s27 = int_to_ptr.hbm [resolvable:$true] %s26
      %s28 = sshll.u32 [#allocation5], 4
      %s29 = int_to_ptr.vmem [resolvable:$true] %s28
      %31 = dma.hbm_to_vmem [thread:$0]  %s27, 16, %s29, [#allocation6]
    $region9: #{tpu_custom_call.1} parent=1 // pred_fallthru
      _
    // Predicated region
    $region10: #{tpu_custom_call.1} parent=1 // pred_check
      _
    $region11: #{tpu_custom_call.1} parent=1 // pred_check_branch
      %33 = sbr.rel (0) target = $region13
    $region12: #{tpu_custom_call.1} parent=1 // pred_region
      %35 = dma.done [#allocation3], 16
    $region13: #{tpu_custom_call.1} parent=1 // pred_fallthru
      _
    // Predicated region
    $region14: #{tpu_custom_call.1} parent=1 // pred_check
      _
    $region15: #{tpu_custom_call.1} parent=1 // pred_check_branch
      %37 = sbr.rel (0) target = $region17
    $region16: #{tpu_custom_call.1} parent=1 // pred_region
      %39 = dma.done [#allocation6], 16
    $region17: #{tpu_custom_call.1} parent=1 // pred_fallthru
      _
    %v40 = vld [vmem:[#allocation2] sm:$0x1]
    %v41 = vld [vmem:[#allocation5] sm:$0x1]
    %v42 = vmul.f32 %v40, %v41
    %43 = vst [vmem:[#allocation7] sm:$0x1] %v42
    // Predicated region
    $region18: #{tpu_custom_call.1} parent=1 // pred_check
      _
    $region19: #{tpu_custom_call.1} parent=1 // pred_check_branch
      %45 = sbr.rel (0) target = $region21
    $region20: #{tpu_custom_call.1} parent=1 // pred_region
      %47 = vsyncadd [#allocation4], 0
      %s49 = sshll.u32 [#allocation7], 4
      %s50 = int_to_ptr.vmem [resolvable:$true] %s49
      %s51 = sshll.u32 %s2, 4
      %s52 = int_to_ptr.hbm [resolvable:$true] %s51
      %54 = dma.vmem_to_hbm [thread:$0]  %s50, 16, %s52, [#allocation4]
    $region21: #{tpu_custom_call.1} parent=1 // pred_fallthru
      _
    // Predicated region
    $region22: #{tpu_custom_call.1} parent=1 // pred_check
      _
    $region23: #{tpu_custom_call.1} parent=1 // pred_check_branch
      %56 = sbr.rel (0) target = $region25
    $region24: #{tpu_custom_call.1} parent=1 // pred_region
      %58 = dma.done [#allocation4], 16
    $region25: #{tpu_custom_call.1} parent=1 // pred_fallthru
      _
    %59 = vsyncpa [#allocation3], 1
    %60 = vsyncpa [#allocation6], 1
    %61 = vsyncpa [#allocation4], 1

</llo_original>
